<compile_context>
chip_gen: v6e
topology: v6e:2x2x1
jax: 0.10.0
libtpu: 0.0.40
codegen_flags: <defaults>
</compile_context>

<pallas_src>
import jax
import jax.numpy as jnp
from jax.experimental import pallas as pl
from jax.experimental.pallas import tpu as pltpu

BN_EPS = 1e-5


def _round_up(a, b):
    return (a + b - 1) // b * b


# ---------------------------------------------------------------------------
# Kernels
# ---------------------------------------------------------------------------
def stats_kernel(p_ref, w_ref, s_ref):
    # recompute plan, pass 1: BN partial sums only (no y written to HBM).
    # p_ref: (TM, K) bf16; w_ref: (K, Cs) bf16; s_ref: (1, 2, Cs) f32 [sum ; sum_sq]
    y = jnp.dot(p_ref[...], w_ref[...], preferred_element_type=jnp.float32)
    s_ref[:, 0:1, :] = jnp.sum(y, axis=0, keepdims=True)[None]
    s_ref[:, 1:2, :] = jnp.sum(y * y, axis=0, keepdims=True)[None]


def matmul_bn_relu_kernel(p_ref, w_ref, ss_ref, o_ref):
    # recompute plan, pass 2: conv matmul fused with BN + ReLU (y never hits HBM).
    y = jnp.dot(p_ref[...], w_ref[...], preferred_element_type=jnp.float32)
    o_ref[...] = jnp.maximum(y * ss_ref[0:1, :] + ss_ref[1:2, :], 0.0)


def conv_y_stats_kernel(p_ref, w_ref, y_ref, s_ref):
    # store plan, pass 1: conv matmul, bf16 y store, f32 BN partial sums from f32 acc.
    y = jnp.dot(p_ref[...], w_ref[...], preferred_element_type=jnp.float32)
    y_ref[...] = y.astype(y_ref.dtype)
    s_ref[:, 0:1, :] = jnp.sum(y, axis=0, keepdims=True)[None]
    s_ref[:, 1:2, :] = jnp.sum(y * y, axis=0, keepdims=True)[None]


def bn_relu_kernel(y_ref, ss_ref, o_ref):
    # store plan, pass 2: BN + ReLU on the bf16 intermediate (upcast on read).
    y = y_ref[...].astype(jnp.float32)
    o_ref[...] = jnp.maximum(y * ss_ref[0:1, :] + ss_ref[1:2, :], 0.0)


# ---------------------------------------------------------------------------
# Tile-size selection: v7x megacore (>= 2 tiles) + v5e 16 MiB scoped-VMEM fit
# ---------------------------------------------------------------------------
def _pick_tm(M, K, Cs, tm_req, store_y):
    TM = min(_round_up(tm_req, 8), _round_up(max(M, 1), 8))
    # v7x megacore: make sure the "parallel" grid axis has >= 2 tiles when M allows it.
    while TM > 8 and -(-M // TM) < 2:
        TM = max(8, _round_up(TM // 2, 8))

    def footprint(t):  # conservative double-buffered working-set estimate (bytes)
        f = 2 * t * K * 2            # patches tile (bf16, double buffered)
        f += 2 * K * Cs * 2          # folded weight slab (bf16, double buffered)
        f += 2 * t * Cs * 4          # f32 output / accumulator tile
        if store_y:
            f += 2 * t * Cs * 2      # bf16 y tile
        f += 4 * 2 * Cs * 4          # stats / scale-shift tiles
        return f

    while TM > 8 and footprint(TM) > 12 * 1024 * 1024:
        TM = max(8, _round_up(TM // 2, 8))
    return TM


# ---------------------------------------------------------------------------
# Forward wrapper
# ---------------------------------------------------------------------------
def up_conv_forward(x_nchw, conv_w, conv_b, bn_gamma, bn_beta, *, tm=1024):
    """x_nchw: (N, Cin, H, W); conv_w: (Cout, Cin, 3, 3). Returns (N, Cout, 2H, 2W) f32."""
    del conv_b  # conv bias cancels exactly against the BatchNorm mean subtraction
    N, Cin, H, W = x_nchw.shape
    Cout = conv_w.shape[0]
    Ho, Wo = 2 * H, 2 * W
    C4 = 4 * Cout
    Cs = _round_up(C4, 128)          # single packed lane-dense slab holding all 4 phases
    K = 9 * Cin
    M = N * H * W

    # ---- glue: NCHW -> NHWC (bf16 BEFORE pad/stack), pad ORIGINAL res by 1, 9-tap im2col
    x = jnp.transpose(x_nchw, (0, 2, 3, 1)).astype(jnp.bfloat16)           # (N,H,W,Cin)
    x_pad = jnp.pad(x, ((0, 0), (1, 1), (1, 1), (0, 0)))                   # (N,H+2,W+2,Cin)
    taps = [x_pad[:, dr:dr + H, dc:dc + W, :] for dr in range(3) for dc in range(3)]
    patches = jnp.stack(taps, axis=3).reshape(M, K)                        # bf16 (M, 9*Cin)

    # ---- plan selection: y bf16 round trip (4*Cs B/row) vs re-reading patches (2*K B/row)
    store_y = (2 * K) >= (4 * Cs)
    TM = _pick_tm(M, K, Cs, tm, store_y)
    M_pad = _round_up(M, TM)
    if M_pad != M:
        patches = jnp.pad(patches, ((0, M_pad - M), (0, 0)))   # zero rows -> zero stats impact
    n_tiles = M_pad // TM

    # ---- sub-pixel fold of the 3x3 weights: phase p=(pi,pj) reads original-x offsets via
    #      dr=(kh+pi+1)//2, dc=(kw+pj+1)//2 (0..2 with zero pad); coinciding taps summed. ----
    w = conv_w.astype(jnp.float32)
    wf = jnp.zeros((4, 3, 3, Cin, Cout), jnp.float32)
    for pi in range(2):
        for pj in range(2):
            p = 2 * pi + pj
            for kh in range(3):
                dr = (kh + pi + 1) // 2
                for kw in range(3):
                    dc = (kw + pj + 1) // 2
                    wf = wf.at[p, dr, dc].add(w[:, :, kh, kw].T)           # (Cin, Cout)
    wf = jnp.transpose(wf.reshape(4, K, Cout), (1, 0, 2)).reshape(K, C4)   # column = p*Cout+c
    wbig = jnp.zeros((K, Cs), jnp.float32).at[:, :C4].set(wf).astype(jnp.bfloat16)

    parallel = pltpu.CompilerParams(dimension_semantics=("parallel",))
    p_spec = pl.BlockSpec((TM, K), lambda i: (i, 0))
    w_spec = pl.BlockSpec((K, Cs), lambda i: (0, 0))
    s_spec = pl.BlockSpec((1, 2, Cs), lambda i: (i, 0, 0))
    o_spec = pl.BlockSpec((TM, Cs), lambda i: (i, 0))
    ss_spec = pl.BlockSpec((2, Cs), lambda i: (0, 0))
    s_shape = jax.ShapeDtypeStruct((n_tiles, 2, Cs), jnp.float32)

    # ---- pass 1: per-tile BN partial stats (+ bf16 y on the store plan) ----
    if store_y:
        y_flat, partials = pl.pallas_call(
            conv_y_stats_kernel,
            out_shape=(jax.ShapeDtypeStruct((M_pad, Cs), jnp.bfloat16), s_shape),
            grid=(n_tiles,),
            in_specs=[p_spec, w_spec],
            out_specs=(o_spec, s_spec),
            compiler_params=parallel,
        )(patches, wbig)
    else:
        partials = pl.pallas_call(
            stats_kernel,
            out_shape=s_shape,
            grid=(n_tiles,),
            in_specs=[p_spec, w_spec],
            out_specs=s_spec,
            compiler_params=parallel,
        )(patches, wbig)

    # ---- tiny O(C) reduction: training-mode BN stats over all N*Ho*Wo positions ----
    col_stats = jnp.sum(partials, axis=0)                         # (2, Cs)
    ch_stats = col_stats[:, :C4].reshape(2, 4, Cout).sum(axis=1)  # combine the 4 phases
    count = jnp.float32(N * Ho * Wo)
    mean = ch_stats[0] / count
    # NOTE: E[y^2]-E[y]^2 in f32 (biased / training variance); switch to mean-shifted
    # per-tile partials if BN stability matters at very large M.
    var = jnp.maximum(ch_stats[1] / count - mean * mean, 0.0)
    inv = jax.lax.rsqrt(var + BN_EPS)
    scale_c = bn_gamma.astype(jnp.float32) * inv
    shift_c = bn_beta.astype(jnp.float32) - mean * scale_c
    ss = (jnp.zeros((2, Cs), jnp.float32)
          .at[0, :C4].set(jnp.tile(scale_c, 4))
          .at[1, :C4].set(jnp.tile(shift_c, 4)))

    # ---- pass 2: BN + ReLU (fused with the recomputed matmul on the recompute plan) ----
    if store_y:
        out_flat = pl.pallas_call(
            bn_relu_kernel,
            out_shape=jax.ShapeDtypeStruct((M_pad, Cs), jnp.float32),
            grid=(n_tiles,),
            in_specs=[o_spec, ss_spec],
            out_specs=o_spec,
            compiler_params=parallel,
        )(y_flat, ss)
    else:
        out_flat = pl.pallas_call(
            matmul_bn_relu_kernel,
            out_shape=jax.ShapeDtypeStruct((M_pad, Cs), jnp.float32),
            grid=(n_tiles,),
            in_specs=[p_spec, w_spec, ss_spec],
            out_specs=o_spec,
            compiler_params=parallel,
        )(patches, wbig, ss)

    # ---- un-interleave the 4 sub-pixel phases back into NCHW (PyTorch layout parity) ----
    y6 = out_flat[:M, :C4].reshape(N, H, W, 2, 2, Cout)            # (N,H,W,pi,pj,Cout)
    out = jnp.transpose(y6, (0, 5, 1, 3, 2, 4)).reshape(N, Cout, Ho, Wo)
    return out


# ---------------------------------------------------------------------------
# Pure-JAX reference (mirrors the PyTorch module exactly) for a sanity check
# ---------------------------------------------------------------------------
def reference_upconv(x_nchw, conv_w, conv_b, gamma, beta):
    N, Cin, H, W = x_nchw.shape
    Cout = conv_w.shape[0]
    x = x_nchw.astype(jnp.float32)
    xu = jnp.broadcast_to(x[:, :, :, None, :, None],
                          (N, Cin, H, 2, W, 2)).reshape(N, Cin, 2 * H, 2 * W)
    xp = jnp.pad(xu, ((0, 0), (0, 0), (1, 1), (1, 1)))
    y = jnp.zeros((N, Cout, 2 * H, 2 * W), jnp.float32)
    for kh in range(3):
        for kw in range(3):
            patch = xp[:, :, kh:kh + 2 * H, kw:kw + 2 * W]
            y = y + jnp.einsum('nchw,oc->nohw', patch, conv_w[:, :, kh, kw].astype(jnp.float32))
    y = y + conv_b.astype(jnp.float32)[None, :, None, None]
    mean = y.mean(axis=(0, 2, 3), keepdims=True)
    var = ((y - mean) ** 2).mean(axis=(0, 2, 3), keepdims=True)
    yn = (y - mean) * jax.lax.rsqrt(var + BN_EPS)
    yn = yn * gamma[None, :, None, None] + beta[None, :, None, None]
    return jnp.maximum(yn, 0.0)


if __name__ == "__main__":
    # Small shapes: batch=2, ch_in=4, ch_out=8, spatial=16
    N, Cin, Cout, H, W = 2, 4, 8, 16, 16

    key = jax.random.PRNGKey(0)
    kx, kw_, kb = jax.random.split(key, 3)

    x = jax.random.normal(kx, (N, Cin, H, W), dtype=jnp.float32)

    fan_in = Cin * 3 * 3
    bound = 1.0 / (fan_in ** 0.5)
    conv_w = jax.random.uniform(kw_, (Cout, Cin, 3, 3), jnp.float32, -bound, bound)
    conv_b = jax.random.uniform(kb, (Cout,), jnp.float32, -bound, bound)
    bn_gamma = jnp.ones((Cout,), jnp.float32)   # nn.BatchNorm2d default init
    bn_beta = jnp.zeros((Cout,), jnp.float32)

    out = jax.jit(up_conv_forward)(x, conv_w, conv_b, bn_gamma, bn_beta)
    jax.block_until_ready(out)
    assert out.shape == (N, Cout, 2 * H, 2 * W)

    ref = reference_upconv(x, conv_w, conv_b, bn_gamma, bn_beta)
    max_err = float(jnp.max(jnp.abs(out - ref)))
    assert max_err < 1e-1, f"max abs err vs reference: {max_err}"

    print("KERNEL_OK")
</pallas_src>

<mosaic_0001>
module attributes {stable_mosaic.version = 11 : i64} {
  func.func @stats_kernel(%arg0: i32, %arg1: memref<256x36xbf16, #tpu.memory_space<vmem>>, %arg2: memref<36x128xbf16, #tpu.memory_space<vmem>>, %arg3: memref<1x2x128xf32, #tpu.memory_space<vmem>>) attributes {dimension_semantics = [#tpu.dimension_semantics<parallel>], iteration_bounds = array<i64: 2>, scalar_prefetch = 0 : i64, scratch_operands = 0 : i64, tpu.core_type = #tpu.core_type<tc>, window_params = [{transform_indices = @transform_0, window_bounds = array<i64: 256, 36>}, {pipeline_mode = #tpu.pipeline_mode<synchronous>, transform_indices = @transform_1, window_bounds = array<i64: 36, 128>}, {transform_indices = @transform_2, window_bounds = array<i64: 1, 2, 128>}]} {
    %c0 = arith.constant 0 : index
    %c0_0 = arith.constant 0 : index
    %0 = vector.load %arg1[%c0, %c0_0] : memref<256x36xbf16, #tpu.memory_space<vmem>>, vector<256x36xbf16>
    %c0_1 = arith.constant 0 : index
    %c0_2 = arith.constant 0 : index
    %1 = vector.load %arg2[%c0_1, %c0_2] : memref<36x128xbf16, #tpu.memory_space<vmem>>, vector<36x128xbf16>
    %cst = arith.constant dense<0.000000e+00> : vector<256x128xf32>
    %2 = tpu.matmul %0, %1, %cst {dimension_numbers = #tpu.dot_dimension_numbers<[1], [0], [0], [1], [0, 0, 1, 1], [], []>} : vector<256x36xbf16>, vector<36x128xbf16>, vector<256x128xf32> -> vector<256x128xf32>
    %cst_3 = arith.constant dense<0.000000e+00> : vector<128xf32>
    %3 = vector.multi_reduction <add>, %2, %cst_3 [0] : vector<256x128xf32> to vector<128xf32>
    %4 = vector.shape_cast %3 : vector<128xf32> to vector<1x128xf32>
    %5 = vector.shape_cast %4 : vector<1x128xf32> to vector<1x1x128xf32>
    %c0_4 = arith.constant 0 : index
    %c0_5 = arith.constant 0 : index
    %c0_6 = arith.constant 0 : index
    %6 = vector.load %arg3[%c0_4, %c0_5, %c0_6] : memref<1x2x128xf32, #tpu.memory_space<vmem>>, vector<1x1x128xf32>
    tpu.vector_store %arg3[%c0_4, %c0_5, %c0_6], %5 {strides = array<i32>} : memref<1x2x128xf32, #tpu.memory_space<vmem>>, vector<1x1x128xf32>,
    %7 = arith.mulf %2, %2 : vector<256x128xf32>
    %cst_7 = arith.constant dense<0.000000e+00> : vector<128xf32>
    %8 = vector.multi_reduction <add>, %7, %cst_7 [0] : vector<256x128xf32> to vector<128xf32>
    %9 = vector.shape_cast %8 : vector<128xf32> to vector<1x128xf32>
    %10 = vector.shape_cast %9 : vector<1x128xf32> to vector<1x1x128xf32>
    %c0_8 = arith.constant 0 : index
    %c1 = arith.constant 1 : index
    %c0_9 = arith.constant 0 : index
    %11 = vector.load %arg3[%c0_8, %c1, %c0_9] : memref<1x2x128xf32, #tpu.memory_space<vmem>>, vector<1x1x128xf32>
    tpu.vector_store %arg3[%c0_8, %c1, %c0_9], %10 {strides = array<i32>} : memref<1x2x128xf32, #tpu.memory_space<vmem>>, vector<1x1x128xf32>,
    return
  }
  func.func @transform_0(%arg0: i32) -> (i32, i32) {
    %c0_i32 = arith.constant 0 : i32
    %c0_i32_0 = arith.constant 0 : i32
    return %arg0, %c0_i32 : i32, i32
  }
  func.func @transform_1(%arg0: i32) -> (i32, i32) {
    %c0_i32 = arith.constant 0 : i32
    %c0_i32_0 = arith.constant 0 : i32
    %c0_i32_1 = arith.constant 0 : i32
    return %c0_i32, %c0_i32_0 : i32, i32
  }
  func.func @transform_2(%arg0: i32) -> (i32, i32, i32) {
    %c0_i32 = arith.constant 0 : i32
    %c0_i32_0 = arith.constant 0 : i32
    %c0_i32_1 = arith.constant 0 : i32
    return %arg0, %c0_i32, %c0_i32_0 : i32, i32, i32
  }
}

module attributes {stable_mosaic.version = 11 : i64} {
  func.func @matmul_bn_relu_kernel(%arg0: i32, %arg1: memref<256x36xbf16, #tpu.memory_space<vmem>>, %arg2: memref<36x128xbf16, #tpu.memory_space<vmem>>, %arg3: memref<2x128xf32, #tpu.memory_space<vmem>>, %arg4: memref<256x128xf32, #tpu.memory_space<vmem>>) attributes {dimension_semantics = [#tpu.dimension_semantics<parallel>], iteration_bounds = array<i64: 2>, scalar_prefetch = 0 : i64, scratch_operands = 0 : i64, tpu.core_type = #tpu.core_type<tc>, window_params = [{transform_indices = @transform_0, window_bounds = array<i64: 256, 36>}, {pipeline_mode = #tpu.pipeline_mode<synchronous>, transform_indices = @transform_1, window_bounds = array<i64: 36, 128>}, {pipeline_mode = #tpu.pipeline_mode<synchronous>, transform_indices = @transform_2, window_bounds = array<i64: 2, 128>}, {transform_indices = @transform_3, window_bounds = array<i64: 256, 128>}]} {
    %c0 = arith.constant 0 : index
    %c0_0 = arith.constant 0 : index
    %0 = vector.load %arg1[%c0, %c0_0] : memref<256x36xbf16, #tpu.memory_space<vmem>>, vector<256x36xbf16>
    %c0_1 = arith.constant 0 : index
    %c0_2 = arith.constant 0 : index
    %1 = vector.load %arg2[%c0_1, %c0_2] : memref<36x128xbf16, #tpu.memory_space<vmem>>, vector<36x128xbf16>
    %cst = arith.constant dense<0.000000e+00> : vector<256x128xf32>
    %2 = tpu.matmul %0, %1, %cst {dimension_numbers = #tpu.dot_dimension_numbers<[1], [0], [0], [1], [0, 0, 1, 1], [], []>} : vector<256x36xbf16>, vector<36x128xbf16>, vector<256x128xf32> -> vector<256x128xf32>
    %c0_3 = arith.constant 0 : index
    %c0_4 = arith.constant 0 : index
    %3 = vector.load %arg3[%c0_3, %c0_4] : memref<2x128xf32, #tpu.memory_space<vmem>>, vector<1x128xf32>
    %4 = vector.broadcast %3 : vector<1x128xf32> to vector<256x128xf32>
    %5 = arith.mulf %2, %4 : vector<256x128xf32>
    %c1 = arith.constant 1 : index
    %c0_5 = arith.constant 0 : index
    %6 = vector.load %arg3[%c1, %c0_5] : memref<2x128xf32, #tpu.memory_space<vmem>>, vector<1x128xf32>
    %7 = vector.broadcast %6 : vector<1x128xf32> to vector<256x128xf32>
    %8 = arith.addf %5, %7 : vector<256x128xf32>
    %cst_6 = arith.constant 0.000000e+00 : f32
    %9 = vector.broadcast %cst_6 : f32 to vector<256x128xf32>
    %10 = arith.maximumf %8, %9 : vector<256x128xf32>
    %c0_7 = arith.constant 0 : index
    %c0_8 = arith.constant 0 : index
    %11 = vector.load %arg4[%c0_7, %c0_8] : memref<256x128xf32, #tpu.memory_space<vmem>>, vector<256x128xf32>
    tpu.vector_store %arg4[%c0_7, %c0_8], %10 {strides = array<i32>} : memref<256x128xf32, #tpu.memory_space<vmem>>, vector<256x128xf32>,
    return
  }
  func.func @transform_0(%arg0: i32) -> (i32, i32) {
    %c0_i32 = arith.constant 0 : i32
    %c0_i32_0 = arith.constant 0 : i32
    return %arg0, %c0_i32 : i32, i32
  }
  func.func @transform_1(%arg0: i32) -> (i32, i32) {
    %c0_i32 = arith.constant 0 : i32
    %c0_i32_0 = arith.constant 0 : i32
    %c0_i32_1 = arith.constant 0 : i32
    return %c0_i32, %c0_i32_0 : i32, i32
  }
  func.func @transform_2(%arg0: i32) -> (i32, i32) {
    %c0_i32 = arith.constant 0 : i32
    %c0_i32_0 = arith.constant 0 : i32
    %c0_i32_1 = arith.constant 0 : i32
    return %c0_i32, %c0_i32_0 : i32, i32
  }
  func.func @transform_3(%arg0: i32) -> (i32, i32) {
    %c0_i32 = arith.constant 0 : i32
    %c0_i32_0 = arith.constant 0 : i32
    return %arg0, %c0_i32 : i32, i32
  }
}

</mosaic_0001>

<llo_original>
// kernel: tile.18
$region0: #{tile.18}
  #allocation0 [shape = 's32[1]{0}', space=sflag, size = 0x4, scoped, tag = 'scoped memory for tile.18']
  %s0 = inlined_call_operand.vmem [shape: f32[8], index: 0, kind: input, shape index: {}]
  %s1 = inlined_call_operand.vmem [shape: f32[4,8], index: 1, kind: output, shape index: {}]
  // Predicated region
  $region2: #{tile.18} parent=0 // pred_check
    _
  $region3: #{tile.18} parent=0 // pred_check_branch
    %3 = sbr.rel (0) target = $region5
  $region4: #{tile.18} parent=0 // pred_region
    _
  $region5: #{tile.18} parent=0 // pred_fallthru
    _
  %v4 = vld [vmem:[%s0] ss:$0 sm:$0xff]
  %5 = vst [vmem:[%s1] sm:$0xf] %v4

// kernel: up_conv_forward.2
$region0: #{up_conv_forward.2}
  #allocation0 [shape = 'u32[]', space=smem, size = 0x4, offset = 0x4, fixed_abs, tag = 'smem constant byte address 0x4 - core index']
  #allocation1 [shape = 'u32[144,128]{1,0:T(1,128)}', space=vmem, size = 0x12000, scoped, tag = 'internal scratch']
  %s0 = inlined_call_operand.vmem [shape: bf16[512,36], index: 0, kind: input, shape index: {}]
  %s1 = inlined_call_operand.vmem [shape: bf16[36,128], index: 1, kind: input, shape index: {}]
  %s2 = inlined_call_operand.vmem [shape: f32[2,2,128], index: 2, kind: output, shape index: {}]
  %s3 = sld [smem:[#allocation0]]
  $region41: #{up_conv_forward.2} parent=0
    _
  %s5 = ssub.s32 1, %s3
  %s6 = scalar_select 0, %s5, %s3
  loop: start=0, step=1, limit=4
  $region2: #{up_conv_forward.2} parent=0 // loop_pre_header
    _
  $region3: #{up_conv_forward.2} parent=0 // loop_header
    %s8 = sphi 0, %s12
    %p9 = scmp.ge.s32.totalorder %s8, 4
    %s18 = sphi 0, %s20
    %s21 = sphi 0, %s18
    %s22 = sphi 0, %s21
    %s38 = sphi 0, %s22
    %s42 = sphi 0, %s42
    %s44 = sphi 0, %s42
    %s45 = sphi 0, %s44
    %s59 = sphi 0, %s45
    %s65 = sphi 0, %s67
    %s68 = sphi 0, %s65
    %s69 = sphi 0, %s68
    %s85 = sphi 0, %s69
  $region4: #{up_conv_forward.2} parent=0 // loop_header_branch
    %11 = sbr.rel (%p9) target = $region8
  $region5: #{up_conv_forward.2} parent=0 // loop_body
    %s13 = ssub.s32 %s8, 1
    %s14 = ssub.s32 %s8, 2
    %s15 = sadd.s32 %s8, 1
    %s16 = ssub.s32 %s8, %s15
    %p17 = scmp.eq.s32.totalorder %s16, 0
    %s19 = sadd.s32 %s18, 1
    %s20 = scalar_select %p17, %s18, %s19
    %p23 = pneg %p17
    %p24 = scmp.eq.s32.totalorder %s8, 1
    %p25 = por %p23, %p24
    %p26 = scmp.ne.s32.totalorder %s18, %s21
    %p27 = scmp.eq.s32.totalorder %s8, 0
    %p28 = por %p26, %p27
    %p29 = scmp.ne.s32.totalorder %s18, %s21
    %p30 = scmp.eq.s32.totalorder %s13, 1
    %p31 = por %p29, %p30
    %p32 = scmp.ne.s32.totalorder %s21, %s22
    %p33 = scmp.eq.s32.totalorder %s13, 0
    %p34 = por %p32, %p33
    %p35 = scmp.ne.s32.totalorder %s21, %s22
    %p36 = scmp.eq.s32.totalorder %s14, 1
    %p37 = por %p35, %p36
    %p39 = scmp.ne.s32.totalorder %s22, %s38
    %p40 = scmp.eq.s32.totalorder %s14, 0
    %p41 = por %p39, %p40
    %s43 = sadd.s32 %s42, 1
    %p46 = scmp.eq.s32.totalorder %s8, 1
    %p47 = scmp.ne.s32.totalorder %s42, %s44
    %p48 = scmp.eq.s32.totalorder %s8, 0
    %p49 = por %p47, %p48
    %p50 = scmp.ne.s32.totalorder %s42, %s44
    %p51 = scmp.eq.s32.totalorder %s13, 1
    %p52 = por %p50, %p51
    %p53 = scmp.ne.s32.totalorder %s44, %s45
    %p54 = scmp.eq.s32.totalorder %s13, 0
    %p55 = por %p53, %p54
    %p56 = scmp.ne.s32.totalorder %s44, %s45
    %p57 = scmp.eq.s32.totalorder %s14, 1
    %p58 = por %p56, %p57
    %p60 = scmp.ne.s32.totalorder %s45, %s59
    %p61 = scmp.eq.s32.totalorder %s14, 0
    %p62 = por %p60, %p61
    %s63 = ssub.s32 %s8, %s15
    %p64 = scmp.eq.s32.totalorder %s63, 0
    %s66 = sadd.s32 %s65, 1
    %s67 = scalar_select %p64, %s65, %s66
    %p70 = pneg %p64
    %p71 = scmp.eq.s32.totalorder %s8, 1
    %p72 = por %p70, %p71
    %p73 = scmp.ne.s32.totalorder %s65, %s68
    %p74 = scmp.eq.s32.totalorder %s8, 0
    %p75 = por %p73, %p74
    %p76 = scmp.ne.s32.totalorder %s65, %s68
    %p77 = scmp.eq.s32.totalorder %s13, 1
    %p78 = por %p76, %p77
    %p79 = scmp.ne.s32.totalorder %s68, %s69
    %p80 = scmp.eq.s32.totalorder %s13, 0
    %p81 = por %p79, %p80
    %p82 = scmp.ne.s32.totalorder %s68, %s69
    %p83 = scmp.eq.s32.totalorder %s14, 1
    %p84 = por %p82, %p83
    %p86 = scmp.ne.s32.totalorder %s69, %s85
    %p87 = scmp.eq.s32.totalorder %s14, 0
    %p88 = por %p86, %p87
    %p89 = scmp.le.s32.totalorder 1, %s8
    %p90 = scmp.lt.s32.totalorder %s8, 3
    %p91 = pnand %p89, %p90
    %p92 = pneg %p91
    // Predicated region
    $region9: #{up_conv_forward.2} parent=5 // pred_check
      _
    $region10: #{up_conv_forward.2} parent=5 // pred_check_branch
      %94 = sbr.rel (%p91) target = $region12
    $region11: #{up_conv_forward.2} parent=5 // pred_region
      %s95 = ssub.s32 %s8, 1
      // Predicated region
      $region13: #{up_conv_forward.2} parent=11 // pred_check
        %p96 = pneg %p55
      $region14: #{up_conv_forward.2} parent=11 // pred_check_branch
        %98 = sbr.rel (%p96) target = $region16
      $region15: #{up_conv_forward.2} parent=11 // pred_region
        _
      $region16: #{up_conv_forward.2} parent=11 // pred_fallthru
        _
    $region12: #{up_conv_forward.2} parent=5 // pred_fallthru
      _
    %p99 = scmp.lt.s32.totalorder %s8, 2
    // Predicated region
    $region17: #{up_conv_forward.2} parent=5 // pred_check
      %p100 = pneg %p99
    $region18: #{up_conv_forward.2} parent=5 // pred_check_branch
      %102 = sbr.rel (%p100) target = $region20
    $region19: #{up_conv_forward.2} parent=5 // pred_region
      // Predicated region
      $region21: #{up_conv_forward.2} parent=19 // pred_check
        %p103 = pneg %p28
      $region22: #{up_conv_forward.2} parent=19 // pred_check_branch
        %105 = sbr.rel (%p103) target = $region24
      $region23: #{up_conv_forward.2} parent=19 // pred_region
        %s106 = smul.u32 32, %s8
        %p107 = scmp.lt.s32.totalorder %s106, 63
        %s108 = scalar_select %p107, %s106, 63
        %s109 = smul.addr %s108, 4
        %s110 = scalar_lea.vmem %s0, %s109
        %s111 = smul.u32 32, %s8
      $region24: #{up_conv_forward.2} parent=19 // pred_fallthru
        _
    $region20: #{up_conv_forward.2} parent=5 // pred_fallthru
      _
    %p112 = scmp.le.s32.totalorder 1, %s8
    %p113 = scmp.lt.s32.totalorder %s8, 3
    %p114 = pnand %p112, %p113
    %p115 = pneg %p114
    // Predicated region
    $region25: #{up_conv_forward.2} parent=5 // pred_check
      _
    $region26: #{up_conv_forward.2} parent=5 // pred_check_branch
      %117 = sbr.rel (%p114) target = $region28
    $region27: #{up_conv_forward.2} parent=5 // pred_region
      %s118 = ssub.s32 %s8, 1
      %s119 = smul.u32 32, %s13
      %p120 = scmp.lt.s32.totalorder %s119, 63
      %s121 = scalar_select %p120, %s119, 63
      %s122 = smul.addr %s121, 4
      %s123 = scalar_lea.vmem %s0, %s122
      %p124 = pneg %p34
      %p125 = pneg %p31
      %p126 = pneg %p55
      %p127 = pneg %p52
      %p128 = pneg %p81
      %p129 = pneg %p78
      %p130 = scmp.lt.s32.totalorder %s13, 1
      %s131 = scalar_select %p130, %s13, 1
      %s132 = smul.addr %s131, 2
      %s133 = scalar_lea.vmem %s2, %s132
      %s134 = smul.u32 32, %s13
      %p135 = scmp.lt.s32.totalorder %s134, 63
      %s136 = scalar_select %p135, %s134, 63
      %s137 = smul.addr %s136, 4
      %s138 = scalar_lea.vmem %s0, %s137
      %s139 = smul.u32 32, %s13
      %p140 = scmp.lt.s32.totalorder %s13, 1
      %s141 = scalar_select %p140, %s13, 1
      %s142 = smul.addr %s141, 2
      %s143 = scalar_lea.vmem %s2, %s142
      %v145 = vld [vmem:[%s138] sm:$0xf]
      %v146 = vld [vmem:[%s138 + $0x4] sm:$0xf]
      %v147 = vld [vmem:[%s138 + $0x8] sm:$0xf]
      %v148 = vld [vmem:[%s138 + $0xc] sm:$0xf]
      %v149 = vld [vmem:[%s138 + $0x10] sm:$0xf]
      %v150 = vld [vmem:[%s138 + $0x14] sm:$0xf]
      %v151 = vld [vmem:[%s138 + $0x18] sm:$0xf]
      %v152 = vld [vmem:[%s138 + $0x1c] sm:$0xf]
      %v153 = vld [vmem:[%s138 + $0x20] sm:$0xf]
      %v154 = vld [vmem:[%s138 + $0x24] sm:$0xf]
      %v155 = vld [vmem:[%s138 + $0x28] sm:$0xf]
      %v156 = vld [vmem:[%s138 + $0x2c] sm:$0xf]
      %v157 = vld [vmem:[%s138 + $0x30] sm:$0xf]
      %v158 = vld [vmem:[%s138 + $0x34] sm:$0xf]
      %v159 = vld [vmem:[%s138 + $0x38] sm:$0xf]
      %v160 = vld [vmem:[%s138 + $0x3c] sm:$0xf]
      %v161 = vld [vmem:[%s138 + $0x40] sm:$0xf]
      %v162 = vld [vmem:[%s138 + $0x44] sm:$0xf]
      %v163 = vld [vmem:[%s138 + $0x48] sm:$0xf]
      %v164 = vld [vmem:[%s138 + $0x4c] sm:$0xf]
      %v165 = vld [vmem:[%s138 + $0x50] sm:$0xf]
      %v166 = vld [vmem:[%s138 + $0x54] sm:$0xf]
      %v167 = vld [vmem:[%s138 + $0x58] sm:$0xf]
      %v168 = vld [vmem:[%s138 + $0x5c] sm:$0xf]
      %v169 = vld [vmem:[%s138 + $0x60] sm:$0xf]
      %v170 = vld [vmem:[%s138 + $0x64] sm:$0xf]
      %v171 = vld [vmem:[%s138 + $0x68] sm:$0xf]
      %v172 = vld [vmem:[%s138 + $0x6c] sm:$0xf]
      %v173 = vld [vmem:[%s138 + $0x70] sm:$0xf]
      %v174 = vld [vmem:[%s138 + $0x74] sm:$0xf]
      %v175 = vld [vmem:[%s138 + $0x78] sm:$0xf]
      %v176 = vld [vmem:[%s138 + $0x7c] sm:$0xf]
      %v177 = vld [vmem:[%s1] sm:$0xf]
      %v178 = vld [vmem:[%s1 + $0x4] sm:$0xf]
      %v179 = vld [vmem:[%s1 + $0x8] sm:$0xf]
      %v180 = vld [vmem:[%s1 + $0xc] sm:$0xf]
      %v181 = vld [vmem:[%s1 + $0x10] sm:$0x3]
      %v214 = vunpack.c.l.b16 %v145
      %v215 = vunpack.c.l.b16 %v146
      %v216 = vunpack.c.l.b16 %v147
      %v217 = vunpack.c.l.b16 %v148
      %v218 = vunpack.c.l.b16 %v149
      %v219 = vunpack.c.l.b16 %v150
      %v220 = vunpack.c.l.b16 %v151
      %v221 = vunpack.c.l.b16 %v152
      %v222 = vunpack.c.l.b16 %v153
      %v223 = vunpack.c.l.b16 %v154
      %v224 = vunpack.c.l.b16 %v155
      %v225 = vunpack.c.l.b16 %v156
      %v226 = vunpack.c.l.b16 %v157
      %v227 = vunpack.c.l.b16 %v158
      %v228 = vunpack.c.l.b16 %v159
      %v229 = vunpack.c.l.b16 %v160
      %v230 = vunpack.c.l.b16 %v161
      %v231 = vunpack.c.l.b16 %v162
      %v232 = vunpack.c.l.b16 %v163
      %v233 = vunpack.c.l.b16 %v164
      %v234 = vunpack.c.l.b16 %v165
      %v235 = vunpack.c.l.b16 %v166
      %v236 = vunpack.c.l.b16 %v167
      %v237 = vunpack.c.l.b16 %v168
      %v238 = vunpack.c.l.b16 %v169
      %v239 = vunpack.c.l.b16 %v170
      %v240 = vunpack.c.l.b16 %v171
      %v241 = vunpack.c.l.b16 %v172
      %v242 = vunpack.c.l.b16 %v173
      %v243 = vunpack.c.l.b16 %v174
      %v244 = vunpack.c.l.b16 %v175
      %v245 = vunpack.c.l.b16 %v176
      %v246 = vpack.c.b16 %v215, %v214
      %v247 = vpack.c.b16 %v217, %v216
      %v248 = vpack.c.b16 %v219, %v218
      %v249 = vpack.c.b16 %v221, %v220
      %v250 = vpack.c.b16 %v223, %v222
      %v251 = vpack.c.b16 %v225, %v224
      %v252 = vpack.c.b16 %v227, %v226
      %v253 = vpack.c.b16 %v229, %v228
      %v254 = vpack.c.b16 %v231, %v230
      %v255 = vpack.c.b16 %v233, %v232
      %v256 = vpack.c.b16 %v235, %v234
      %v257 = vpack.c.b16 %v237, %v236
      %v258 = vpack.c.b16 %v239, %v238
      %v259 = vpack.c.b16 %v241, %v240
      %v260 = vpack.c.b16 %v243, %v242
      %v261 = vpack.c.b16 %v245, %v244
      %v267 = vunpack.c.l.b16 %v177
      %v268 = vunpack.c.l.b16 %v178
      %v269 = vunpack.c.l.b16 %v179
      %v270 = vunpack.c.l.b16 %v180
      %v271 = vunpack.c.l.b16 %v181
      %v272 = vpack.c.b16 %v268, %v267
      %v273 = vpack.c.b16 %v270, %v269
      %v274 = vpack.c.b16 %v271, %v271
      %vm277 = vcmask 293888
      %v279 = vsel %vm277, %v246, 0
      %v282 = vsel %vm277, %v247, 0
      %v285 = vsel %vm277, %v248, 0
      %v288 = vsel %vm277, %v249, 0
      %v291 = vsel %vm277, %v250, 0
      %v294 = vsel %vm277, %v251, 0
      %v297 = vsel %vm277, %v252, 0
      %v300 = vsel %vm277, %v253, 0
      %v303 = vsel %vm277, %v254, 0
      %v306 = vsel %vm277, %v255, 0
      %v309 = vsel %vm277, %v256, 0
      %v312 = vsel %vm277, %v257, 0
      %v315 = vsel %vm277, %v258, 0
      %v318 = vsel %vm277, %v259, 0
      %v321 = vsel %vm277, %v260, 0
      %v324 = vsel %vm277, %v261, 0
      %vm326 = vcmask 1041408
      %v328 = vsel %vm326, %v274, 0
      %330 = vmatprep.subr.bf16.mxu0 0
      %331 = vmatpush1.bf16.msra.mxu0 0
      %332 = vmatprep.subr.bf16.mxu0 0
      %333 = vmatpush1.bf16.msra.mxu0 0
      %334 = vmatprep.subr.bf16.mxu0 0
      %335 = vmatpush1.bf16.msra.mxu0 0
      %336 = vmatprep.subr.bf16.mxu0 0
      %337 = vmatpush1.bf16.msra.mxu0 0
      %338 = vmatprep.subr.bf16.mxu0 0
      %339 = vmatpush1.bf16.msra.mxu0 0
      %340 = vmatprep.subr.bf16.mxu0 0
      %341 = vmatpush1.bf16.msra.mxu0 %v328
      %342 = vmatprep.subr.bf16.mxu0 0
      %343 = vmatpush1.bf16.msra.mxu0 %v273
      %344 = vmatprep.subr.bf16.mxu0 0
      %345 = vmatpush1.bf16.msra.mxu0 %v272
      %346 = vmatprep.subr.bf16.mxu0 0
      %347 = vmatpush2.bf16.msra.mxu0 0
      %348 = vmatprep.subr.bf16.mxu0 0
      %349 = vmatpush2.bf16.msra.mxu0 0
      %350 = vmatprep.subr.bf16.mxu0 0
      %351 = vmatpush2.bf16.msra.mxu0 0
      %352 = vmatprep.subr.bf16.mxu0 0
      %353 = vmatpush2.bf16.msra.mxu0 0
      %354 = vmatprep.subr.bf16.mxu0 0
      %355 = vmatpush2.bf16.msra.mxu0 0
      %356 = vmatprep.subr.bf16.mxu0 0
      %357 = vmatpush2.bf16.msra.mxu0 0
      %358 = vmatprep.subr.bf16.mxu0 0
      %359 = vmatpush2.bf16.msra.mxu0 0
      %360 = vmatprep.subr.bf16.mxu0 0
      %361 = vmatpush2.bf16.msra.mxu0 0
      %362 = vmatprep.mubr.bf16.mxu0 0
      %363 = vmatmul.mubr.bf16.gmra.mxu0 %v279
      %v364 = vpop.f32.mrf.mxu0
      %v365 = vadd.f32 0.0, %v364
      %v366 = vpop.f32.mrf.mxu0
      %v367 = vpop.f32.mrf.mxu0
      %v368 = vadd.f32 0.0, %v367
      %v369 = vpop.f32.mrf.mxu0
      %370 = vmatprep.mubr.bf16.mxu0 0
      %371 = vmatmul.mubr.bf16.gmra.mxu0 %v282
      %v372 = vpop.f32.mrf.mxu0
      %v373 = vadd.f32 0.0, %v372
      %v374 = vpop.f32.mrf.mxu0
      %v375 = vpop.f32.mrf.mxu0
      %v376 = vadd.f32 0.0, %v375
      %v377 = vpop.f32.mrf.mxu0
      %378 = vmatprep.mubr.bf16.mxu0 0
      %379 = vmatmul.mubr.bf16.gmra.mxu0 %v285
      %v380 = vpop.f32.mrf.mxu0
      %v381 = vadd.f32 0.0, %v380
      %v382 = vpop.f32.mrf.mxu0
      %v383 = vpop.f32.mrf.mxu0
      %v384 = vadd.f32 0.0, %v383
      %v385 = vpop.f32.mrf.mxu0
      %386 = vmatprep.mubr.bf16.mxu0 0
      %387 = vmatmul.mubr.bf16.gmra.mxu0 %v288
      %v388 = vpop.f32.mrf.mxu0
      %v389 = vadd.f32 0.0, %v388
      %v390 = vpop.f32.mrf.mxu0
      %v391 = vpop.f32.mrf.mxu0
      %v392 = vadd.f32 0.0, %v391
      %v393 = vpop.f32.mrf.mxu0
      %394 = vmatprep.mubr.bf16.mxu0 0
      %395 = vmatmul.mubr.bf16.gmra.mxu0 %v291
      %v396 = vpop.f32.mrf.mxu0
      %v397 = vadd.f32 0.0, %v396
      %v398 = vpop.f32.mrf.mxu0
      %v399 = vpop.f32.mrf.mxu0
      %v400 = vadd.f32 0.0, %v399
      %v401 = vpop.f32.mrf.mxu0
      %402 = vmatprep.mubr.bf16.mxu0 0
      %403 = vmatmul.mubr.bf16.gmra.mxu0 %v294
      %v404 = vpop.f32.mrf.mxu0
      %v405 = vadd.f32 0.0, %v404
      %v406 = vpop.f32.mrf.mxu0
      %v407 = vpop.f32.mrf.mxu0
      %v408 = vadd.f32 0.0, %v407
      %v409 = vpop.f32.mrf.mxu0
      %410 = vmatprep.mubr.bf16.mxu0 0
      %411 = vmatmul.mubr.bf16.gmra.mxu0 %v297
      %v412 = vpop.f32.mrf.mxu0
      %v413 = vadd.f32 0.0, %v412
      %v414 = vpop.f32.mrf.mxu0
      %v415 = vpop.f32.mrf.mxu0
      %v416 = vadd.f32 0.0, %v415
      %v417 = vpop.f32.mrf.mxu0
      %418 = vmatprep.mubr.bf16.mxu0 0
      %419 = vmatmul.mubr.bf16.gmra.mxu0 %v300
      %v420 = vpop.f32.mrf.mxu0
      %v421 = vadd.f32 0.0, %v420
      %v422 = vpop.f32.mrf.mxu0
      %v423 = vpop.f32.mrf.mxu0
      %v424 = vadd.f32 0.0, %v423
      %v425 = vpop.f32.mrf.mxu0
      %426 = vmatprep.mubr.bf16.mxu0 0
      %427 = vmatmul.mubr.bf16.gmra.mxu0 %v303
      %v428 = vpop.f32.mrf.mxu0
      %v429 = vadd.f32 0.0, %v428
      %v430 = vpop.f32.mrf.mxu0
      %v431 = vpop.f32.mrf.mxu0
      %v432 = vadd.f32 0.0, %v431
      %v433 = vpop.f32.mrf.mxu0
      %434 = vmatprep.mubr.bf16.mxu0 0
      %435 = vmatmul.mubr.bf16.gmra.mxu0 %v306
      %v436 = vpop.f32.mrf.mxu0
      %v437 = vadd.f32 0.0, %v436
      %v438 = vpop.f32.mrf.mxu0
      %v439 = vpop.f32.mrf.mxu0
      %v440 = vadd.f32 0.0, %v439
      %v441 = vpop.f32.mrf.mxu0
      %442 = vmatprep.mubr.bf16.mxu0 0
      %443 = vmatmul.mubr.bf16.gmra.mxu0 %v309
      %v444 = vpop.f32.mrf.mxu0
      %v445 = vadd.f32 0.0, %v444
      %v446 = vpop.f32.mrf.mxu0
      %v447 = vpop.f32.mrf.mxu0
      %v448 = vadd.f32 0.0, %v447
      %v449 = vpop.f32.mrf.mxu0
      %450 = vmatprep.mubr.bf16.mxu0 0
      %451 = vmatmul.mubr.bf16.gmra.mxu0 %v312
      %v452 = vpop.f32.mrf.mxu0
      %v453 = vadd.f32 0.0, %v452
      %v454 = vpop.f32.mrf.mxu0
      %v455 = vpop.f32.mrf.mxu0
      %v456 = vadd.f32 0.0, %v455
      %v457 = vpop.f32.mrf.mxu0
      %458 = vmatprep.mubr.bf16.mxu0 0
      %459 = vmatmul.mubr.bf16.gmra.mxu0 %v315
      %v460 = vpop.f32.mrf.mxu0
      %v461 = vadd.f32 0.0, %v460
      %v462 = vpop.f32.mrf.mxu0
      %v463 = vpop.f32.mrf.mxu0
      %v464 = vadd.f32 0.0, %v463
      %v465 = vpop.f32.mrf.mxu0
      %466 = vmatprep.mubr.bf16.mxu0 0
      %467 = vmatmul.mubr.bf16.gmra.mxu0 %v318
      %v468 = vpop.f32.mrf.mxu0
      %v469 = vadd.f32 0.0, %v468
      %v470 = vpop.f32.mrf.mxu0
      %v471 = vpop.f32.mrf.mxu0
      %v472 = vadd.f32 0.0, %v471
      %v473 = vpop.f32.mrf.mxu0
      %474 = vmatprep.mubr.bf16.mxu0 0
      %475 = vmatmul.mubr.bf16.gmra.mxu0 %v321
      %v476 = vpop.f32.mrf.mxu0
      %v477 = vadd.f32 0.0, %v476
      %v478 = vpop.f32.mrf.mxu0
      %v479 = vpop.f32.mrf.mxu0
      %v480 = vadd.f32 0.0, %v479
      %v481 = vpop.f32.mrf.mxu0
      %482 = vmatprep.mubr.bf16.mxu0 0
      %483 = vmatmul.mubr.bf16.gmra.mxu0 %v324
      %v484 = vpop.f32.mrf.mxu0
      %v485 = vadd.f32 0.0, %v484
      %v486 = vpop.f32.mrf.mxu0
      %v487 = vpop.f32.mrf.mxu0
      %v488 = vadd.f32 0.0, %v487
      %v489 = vpop.f32.mrf.mxu0
      %490 = vdwg.mxu0
      %v491 = vadd.f32 %v365, %v368
      %v492 = vadd.f32 %v491, %v373
      %v493 = vadd.f32 %v492, %v376
      %v494 = vadd.f32 %v493, %v381
      %v495 = vadd.f32 %v494, %v384
      %v496 = vadd.f32 %v495, %v389
      %v497 = vadd.f32 %v496, %v392
      %v498 = vadd.f32 %v497, %v397
      %v499 = vadd.f32 %v498, %v400
      %v500 = vadd.f32 %v499, %v405
      %v501 = vadd.f32 %v500, %v408
      %v502 = vadd.f32 %v501, %v413
      %v503 = vadd.f32 %v502, %v416
      %v504 = vadd.f32 %v503, %v421
      %v505 = vadd.f32 %v504, %v424
      %v506 = vadd.f32 %v505, %v429
      %v507 = vadd.f32 %v506, %v432
      %v508 = vadd.f32 %v507, %v437
      %v509 = vadd.f32 %v508, %v440
      %v510 = vadd.f32 %v509, %v445
      %v511 = vadd.f32 %v510, %v448
      %v512 = vadd.f32 %v511, %v453
      %v513 = vadd.f32 %v512, %v456
      %v514 = vadd.f32 %v513, %v461
      %v515 = vadd.f32 %v514, %v464
      %v516 = vadd.f32 %v515, %v469
      %v517 = vadd.f32 %v516, %v472
      %v518 = vadd.f32 %v517, %v477
      %v519 = vadd.f32 %v518, %v480
      %v520 = vadd.f32 %v519, %v485
      %v521 = vadd.f32 %v520, %v488
      %v522 = vrot.slane %v521, 4
      %v523 = vadd.f32 %v521, %v522
      %v524 = vrot.slane %v523, 2
      %v525 = vadd.f32 %v523, %v524
      %v526 = vrot.slane %v525, 1
      %v527 = vadd.f32 %v525, %v526
      %528 = vst [vmem:[%s143] sm:$0x1] %v527
      %v529 = vmul.f32 %v365, %v365
      %v530 = vmul.f32 %v368, %v368
      %v531 = vmul.f32 %v373, %v373
      %v532 = vmul.f32 %v376, %v376
      %v533 = vmul.f32 %v381, %v381
      %v534 = vmul.f32 %v384, %v384
      %v535 = vmul.f32 %v389, %v389
      %v536 = vmul.f32 %v392, %v392
      %v537 = vmul.f32 %v397, %v397
      %v538 = vmul.f32 %v400, %v400
      %v539 = vmul.f32 %v405, %v405
      %v540 = vmul.f32 %v408, %v408
      %v541 = vmul.f32 %v413, %v413
      %v542 = vmul.f32 %v416, %v416
      %v543 = vmul.f32 %v421, %v421
      %v544 = vmul.f32 %v424, %v424
      %v545 = vmul.f32 %v429, %v429
      %v546 = vmul.f32 %v432, %v432
      %v547 = vmul.f32 %v437, %v437
      %v548 = vmul.f32 %v440, %v440
      %v549 = vmul.f32 %v445, %v445
      %v550 = vmul.f32 %v448, %v448
      %v551 = vmul.f32 %v453, %v453
      %v552 = vmul.f32 %v456, %v456
      %v553 = vmul.f32 %v461, %v461
      %v554 = vmul.f32 %v464, %v464
      %v555 = vmul.f32 %v469, %v469
      %v556 = vmul.f32 %v472, %v472
      %v557 = vmul.f32 %v477, %v477
      %v558 = vmul.f32 %v480, %v480
      %v559 = vmul.f32 %v485, %v485
      %v560 = vmul.f32 %v488, %v488
      %v561 = vadd.f32 %v529, %v530
      %v562 = vadd.f32 %v561, %v531
      %v563 = vadd.f32 %v562, %v532
      %v564 = vadd.f32 %v563, %v533
      %v565 = vadd.f32 %v564, %v534
      %v566 = vadd.f32 %v565, %v535
      %v567 = vadd.f32 %v566, %v536
      %v568 = vadd.f32 %v567, %v537
      %v569 = vadd.f32 %v568, %v538
      %v570 = vadd.f32 %v569, %v539
      %v571 = vadd.f32 %v570, %v540
      %v572 = vadd.f32 %v571, %v541
      %v573 = vadd.f32 %v572, %v542
      %v574 = vadd.f32 %v573, %v543
      %v575 = vadd.f32 %v574, %v544
      %v576 = vadd.f32 %v575, %v545
      %v577 = vadd.f32 %v576, %v546
      %v578 = vadd.f32 %v577, %v547
      %v579 = vadd.f32 %v578, %v548
      %v580 = vadd.f32 %v579, %v549
      %v581 = vadd.f32 %v580, %v550
      %v582 = vadd.f32 %v581, %v551
      %v583 = vadd.f32 %v582, %v552
      %v584 = vadd.f32 %v583, %v553
      %v585 = vadd.f32 %v584, %v554
      %v586 = vadd.f32 %v585, %v555
      %v587 = vadd.f32 %v586, %v556
      %v588 = vadd.f32 %v587, %v557
      %v589 = vadd.f32 %v588, %v558
      %v590 = vadd.f32 %v589, %v559
      %v591 = vadd.f32 %v590, %v560
      %v592 = vrot.slane %v591, 4
      %v593 = vadd.f32 %v591, %v592
      %v594 = vrot.slane %v593, 2
      %v595 = vadd.f32 %v593, %v594
      %v596 = vrot.slane %v595, 1
      %v597 = vadd.f32 %v595, %v596
      %598 = vst [vmem:[%s143 + $0x1] sm:$0x1] %v597
      %p599 = scmp.lt.s32.totalorder %s13, 1
      %s600 = scalar_select %p599, %s13, 1
      %s601 = smul.addr %s600, 2
      %s602 = scalar_lea.vmem %s2, %s601
      // Predicated region
      $region29: #{up_conv_forward.2} parent=27 // pred_check
        %p603 = pneg %p78
      $region30: #{up_conv_forward.2} parent=27 // pred_check_branch
        %605 = sbr.rel (%p603) target = $region32
      $region31: #{up_conv_forward.2} parent=27 // pred_region
        _
      $region32: #{up_conv_forward.2} parent=27 // pred_fallthru
        _
    $region28: #{up_conv_forward.2} parent=5 // pred_fallthru
      _
    %p606 = scmp.le.s32.totalorder 2, %s8
    // Predicated region
    $region33: #{up_conv_forward.2} parent=5 // pred_check
      %p607 = pneg %p606
    $region34: #{up_conv_forward.2} parent=5 // pred_check_branch
      %609 = sbr.rel (%p607) target = $region36
    $region35: #{up_conv_forward.2} parent=5 // pred_region
      %s610 = ssub.s32 %s8, 2
      // Predicated region
      $region37: #{up_conv_forward.2} parent=35 // pred_check
        %p611 = pneg %p84
      $region38: #{up_conv_forward.2} parent=35 // pred_check_branch
        %613 = sbr.rel (%p611) target = $region40
      $region39: #{up_conv_forward.2} parent=35 // pred_region
        %p614 = scmp.lt.s32.totalorder %s14, 1
        %s615 = scalar_select %p614, %s14, 1
        %s616 = smul.addr %s615, 2
        %s617 = scalar_lea.vmem %s2, %s616
      $region40: #{up_conv_forward.2} parent=35 // pred_fallthru
        _
    $region36: #{up_conv_forward.2} parent=5 // pred_fallthru
      _
  $region6: #{up_conv_forward.2} parent=0 // loop_footer
    %s12 = sadd.s32 1, %s8
  $region7: #{up_conv_forward.2} parent=0 // loop_footer_branch
    %7 = sbr.rel target = $region3
  $region8: #{up_conv_forward.2} parent=0 // loop_exit
    _

// kernel: up_conv_forward.3
$region0: #{up_conv_forward.3}
  #allocation0 [shape = 'u32[]', space=smem, size = 0x4, offset = 0x4, fixed_abs, tag = 'smem constant byte address 0x4 - core index']
  #allocation1 [shape = 'u32[144,128]{1,0:T(1,128)}', space=vmem, size = 0x12000, scoped, tag = 'internal scratch']
  %s0 = inlined_call_operand.vmem [shape: bf16[512,36], index: 0, kind: input, shape index: {}]
  %s1 = inlined_call_operand.vmem [shape: bf16[36,128], index: 1, kind: input, shape index: {}]
  %s2 = inlined_call_operand.vmem [shape: f32[2,128], index: 2, kind: input, shape index: {}]
  %s3 = inlined_call_operand.vmem [shape: f32[512,128], index: 3, kind: output, shape index: {}]
  %s4 = sld [smem:[#allocation0]]
  $region45: #{up_conv_forward.3} parent=0
    _
  %s6 = ssub.s32 1, %s4
  %s7 = scalar_select 0, %s6, %s4
  loop: start=0, step=1, limit=4
  $region2: #{up_conv_forward.3} parent=0 // loop_pre_header
    _
  $region3: #{up_conv_forward.3} parent=0 // loop_header
    %s9 = sphi 0, %s13
    %p10 = scmp.ge.s32.totalorder %s9, 4
    %s19 = sphi 0, %s21
    %s22 = sphi 0, %s19
    %s23 = sphi 0, %s22
    %s39 = sphi 0, %s23
    %s43 = sphi 0, %s43
    %s45 = sphi 0, %s43
    %s46 = sphi 0, %s45
    %s60 = sphi 0, %s46
    %s64 = sphi 0, %s64
    %s66 = sphi 0, %s64
    %s67 = sphi 0, %s66
    %s81 = sphi 0, %s67
    %s87 = sphi 0, %s89
    %s90 = sphi 0, %s87
    %s91 = sphi 0, %s90
    %s107 = sphi 0, %s91
  $region4: #{up_conv_forward.3} parent=0 // loop_header_branch
    %12 = sbr.rel (%p10) target = $region8
  $region5: #{up_conv_forward.3} parent=0 // loop_body
    %s14 = ssub.s32 %s9, 1
    %s15 = ssub.s32 %s9, 2
    %s16 = sadd.s32 %s9, 1
    %s17 = ssub.s32 %s9, %s16
    %p18 = scmp.eq.s32.totalorder %s17, 0
    %s20 = sadd.s32 %s19, 1
    %s21 = scalar_select %p18, %s19, %s20
    %p24 = pneg %p18
    %p25 = scmp.eq.s32.totalorder %s9, 1
    %p26 = por %p24, %p25
    %p27 = scmp.ne.s32.totalorder %s19, %s22
    %p28 = scmp.eq.s32.totalorder %s9, 0
    %p29 = por %p27, %p28
    %p30 = scmp.ne.s32.totalorder %s19, %s22
    %p31 = scmp.eq.s32.totalorder %s14, 1
    %p32 = por %p30, %p31
    %p33 = scmp.ne.s32.totalorder %s22, %s23
    %p34 = scmp.eq.s32.totalorder %s14, 0
    %p35 = por %p33, %p34
    %p36 = scmp.ne.s32.totalorder %s22, %s23
    %p37 = scmp.eq.s32.totalorder %s15, 1
    %p38 = por %p36, %p37
    %p40 = scmp.ne.s32.totalorder %s23, %s39
    %p41 = scmp.eq.s32.totalorder %s15, 0
    %p42 = por %p40, %p41
    %s44 = sadd.s32 %s43, 1
    %p47 = scmp.eq.s32.totalorder %s9, 1
    %p48 = scmp.ne.s32.totalorder %s43, %s45
    %p49 = scmp.eq.s32.totalorder %s9, 0
    %p50 = por %p48, %p49
    %p51 = scmp.ne.s32.totalorder %s43, %s45
    %p52 = scmp.eq.s32.totalorder %s14, 1
    %p53 = por %p51, %p52
    %p54 = scmp.ne.s32.totalorder %s45, %s46
    %p55 = scmp.eq.s32.totalorder %s14, 0
    %p56 = por %p54, %p55
    %p57 = scmp.ne.s32.totalorder %s45, %s46
    %p58 = scmp.eq.s32.totalorder %s15, 1
    %p59 = por %p57, %p58
    %p61 = scmp.ne.s32.totalorder %s46, %s60
    %p62 = scmp.eq.s32.totalorder %s15, 0
    %p63 = por %p61, %p62
    %s65 = sadd.s32 %s64, 1
    %p68 = scmp.eq.s32.totalorder %s9, 1
    %p69 = scmp.ne.s32.totalorder %s64, %s66
    %p70 = scmp.eq.s32.totalorder %s9, 0
    %p71 = por %p69, %p70
    %p72 = scmp.ne.s32.totalorder %s64, %s66
    %p73 = scmp.eq.s32.totalorder %s14, 1
    %p74 = por %p72, %p73
    %p75 = scmp.ne.s32.totalorder %s66, %s67
    %p76 = scmp.eq.s32.totalorder %s14, 0
    %p77 = por %p75, %p76
    %p78 = scmp.ne.s32.totalorder %s66, %s67
    %p79 = scmp.eq.s32.totalorder %s15, 1
    %p80 = por %p78, %p79
    %p82 = scmp.ne.s32.totalorder %s67, %s81
    %p83 = scmp.eq.s32.totalorder %s15, 0
    %p84 = por %p82, %p83
    %s85 = ssub.s32 %s9, %s16
    %p86 = scmp.eq.s32.totalorder %s85, 0
    %s88 = sadd.s32 %s87, 1
    %s89 = scalar_select %p86, %s87, %s88
    %p92 = pneg %p86
    %p93 = scmp.eq.s32.totalorder %s9, 1
    %p94 = por %p92, %p93
    %p95 = scmp.ne.s32.totalorder %s87, %s90
    %p96 = scmp.eq.s32.totalorder %s9, 0
    %p97 = por %p95, %p96
    %p98 = scmp.ne.s32.totalorder %s87, %s90
    %p99 = scmp.eq.s32.totalorder %s14, 1
    %p100 = por %p98, %p99
    %p101 = scmp.ne.s32.totalorder %s90, %s91
    %p102 = scmp.eq.s32.totalorder %s14, 0
    %p103 = por %p101, %p102
    %p104 = scmp.ne.s32.totalorder %s90, %s91
    %p105 = scmp.eq.s32.totalorder %s15, 1
    %p106 = por %p104, %p105
    %p108 = scmp.ne.s32.totalorder %s91, %s107
    %p109 = scmp.eq.s32.totalorder %s15, 0
    %p110 = por %p108, %p109
    %p111 = scmp.le.s32.totalorder 1, %s9
    %p112 = scmp.lt.s32.totalorder %s9, 3
    %p113 = pnand %p111, %p112
    %p114 = pneg %p113
    // Predicated region
    $region9: #{up_conv_forward.3} parent=5 // pred_check
      _
    $region10: #{up_conv_forward.3} parent=5 // pred_check_branch
      %116 = sbr.rel (%p113) target = $region12
    $region11: #{up_conv_forward.3} parent=5 // pred_region
      %s117 = ssub.s32 %s9, 1
      // Predicated region
      $region13: #{up_conv_forward.3} parent=11 // pred_check
        %p118 = pneg %p56
      $region14: #{up_conv_forward.3} parent=11 // pred_check_branch
        %120 = sbr.rel (%p118) target = $region16
      $region15: #{up_conv_forward.3} parent=11 // pred_region
        _
      $region16: #{up_conv_forward.3} parent=11 // pred_fallthru
        _
      // Predicated region
      $region17: #{up_conv_forward.3} parent=11 // pred_check
        %p121 = pneg %p77
      $region18: #{up_conv_forward.3} parent=11 // pred_check_branch
        %123 = sbr.rel (%p121) target = $region20
      $region19: #{up_conv_forward.3} parent=11 // pred_region
        _
      $region20: #{up_conv_forward.3} parent=11 // pred_fallthru
        _
    $region12: #{up_conv_forward.3} parent=5 // pred_fallthru
      _
    %p124 = scmp.lt.s32.totalorder %s9, 2
    // Predicated region
    $region21: #{up_conv_forward.3} parent=5 // pred_check
      %p125 = pneg %p124
    $region22: #{up_conv_forward.3} parent=5 // pred_check_branch
      %127 = sbr.rel (%p125) target = $region24
    $region23: #{up_conv_forward.3} parent=5 // pred_region
      // Predicated region
      $region25: #{up_conv_forward.3} parent=23 // pred_check
        %p128 = pneg %p29
      $region26: #{up_conv_forward.3} parent=23 // pred_check_branch
        %130 = sbr.rel (%p128) target = $region28
      $region27: #{up_conv_forward.3} parent=23 // pred_region
        %s131 = smul.u32 32, %s9
        %p132 = scmp.lt.s32.totalorder %s131, 63
        %s133 = scalar_select %p132, %s131, 63
        %s134 = smul.addr %s133, 4
        %s135 = scalar_lea.vmem %s0, %s134
        %s136 = smul.u32 32, %s9
      $region28: #{up_conv_forward.3} parent=23 // pred_fallthru
        _
    $region24: #{up_conv_forward.3} parent=5 // pred_fallthru
      _
    %p137 = scmp.le.s32.totalorder 1, %s9
    %p138 = scmp.lt.s32.totalorder %s9, 3
    %p139 = pnand %p137, %p138
    %p140 = pneg %p139
    // Predicated region
    $region29: #{up_conv_forward.3} parent=5 // pred_check
      _
    $region30: #{up_conv_forward.3} parent=5 // pred_check_branch
      %142 = sbr.rel (%p139) target = $region32
    $region31: #{up_conv_forward.3} parent=5 // pred_region
      %s143 = ssub.s32 %s9, 1
      %s144 = smul.u32 32, %s14
      %p145 = scmp.lt.s32.totalorder %s144, 63
      %s146 = scalar_select %p145, %s144, 63
      %s147 = smul.addr %s146, 4
      %s148 = scalar_lea.vmem %s0, %s147
      %p149 = pneg %p35
      %p150 = pneg %p32
      %p151 = pneg %p56
      %p152 = pneg %p53
      %p153 = pneg %p77
      %p154 = pneg %p74
      %p155 = pneg %p103
      %p156 = pneg %p100
      %s157 = smul.u32 32, %s14
      %p158 = scmp.lt.s32.totalorder %s157, 63
      %s159 = scalar_select %p158, %s157, 63
      %s160 = smul.addr %s159, 8
      %s161 = scalar_lea.vmem %s3, %s160
      %s162 = smul.u32 32, %s14
      %p163 = scmp.lt.s32.totalorder %s162, 63
      %s164 = scalar_select %p163, %s162, 63
      %s165 = smul.addr %s164, 4
      %s166 = scalar_lea.vmem %s0, %s165
      %s167 = smul.u32 32, %s14
      %s168 = smul.u32 32, %s14
      %p169 = scmp.lt.s32.totalorder %s168, 63
      %s170 = scalar_select %p169, %s168, 63
      %s171 = smul.addr %s170, 8
      %s172 = scalar_lea.vmem %s3, %s171
      %s173 = smul.u32 32, %s14
      %v175 = vld [vmem:[%s166] sm:$0xf]
      %v176 = vld [vmem:[%s166 + $0x4] sm:$0xf]
      %v177 = vld [vmem:[%s166 + $0x8] sm:$0xf]
      %v178 = vld [vmem:[%s166 + $0xc] sm:$0xf]
      %v179 = vld [vmem:[%s166 + $0x10] sm:$0xf]
      %v180 = vld [vmem:[%s166 + $0x14] sm:$0xf]
      %v181 = vld [vmem:[%s166 + $0x18] sm:$0xf]
      %v182 = vld [vmem:[%s166 + $0x1c] sm:$0xf]
      %v183 = vld [vmem:[%s166 + $0x20] sm:$0xf]
      %v184 = vld [vmem:[%s166 + $0x24] sm:$0xf]
      %v185 = vld [vmem:[%s166 + $0x28] sm:$0xf]
      %v186 = vld [vmem:[%s166 + $0x2c] sm:$0xf]
      %v187 = vld [vmem:[%s166 + $0x30] sm:$0xf]
      %v188 = vld [vmem:[%s166 + $0x34] sm:$0xf]
      %v189 = vld [vmem:[%s166 + $0x38] sm:$0xf]
      %v190 = vld [vmem:[%s166 + $0x3c] sm:$0xf]
      %v191 = vld [vmem:[%s166 + $0x40] sm:$0xf]
      %v192 = vld [vmem:[%s166 + $0x44] sm:$0xf]
      %v193 = vld [vmem:[%s166 + $0x48] sm:$0xf]
      %v194 = vld [vmem:[%s166 + $0x4c] sm:$0xf]
      %v195 = vld [vmem:[%s166 + $0x50] sm:$0xf]
      %v196 = vld [vmem:[%s166 + $0x54] sm:$0xf]
      %v197 = vld [vmem:[%s166 + $0x58] sm:$0xf]
      %v198 = vld [vmem:[%s166 + $0x5c] sm:$0xf]
      %v199 = vld [vmem:[%s166 + $0x60] sm:$0xf]
      %v200 = vld [vmem:[%s166 + $0x64] sm:$0xf]
      %v201 = vld [vmem:[%s166 + $0x68] sm:$0xf]
      %v202 = vld [vmem:[%s166 + $0x6c] sm:$0xf]
      %v203 = vld [vmem:[%s166 + $0x70] sm:$0xf]
      %v204 = vld [vmem:[%s166 + $0x74] sm:$0xf]
      %v205 = vld [vmem:[%s166 + $0x78] sm:$0xf]
      %v206 = vld [vmem:[%s166 + $0x7c] sm:$0xf]
      %v207 = vld [vmem:[%s1] sm:$0xf]
      %v208 = vld [vmem:[%s1 + $0x4] sm:$0xf]
      %v209 = vld [vmem:[%s1 + $0x8] sm:$0xf]
      %v210 = vld [vmem:[%s1 + $0xc] sm:$0xf]
      %v211 = vld [vmem:[%s1 + $0x10] sm:$0x3]
      %v244 = vunpack.c.l.b16 %v175
      %v245 = vunpack.c.l.b16 %v176
      %v246 = vunpack.c.l.b16 %v177
      %v247 = vunpack.c.l.b16 %v178
      %v248 = vunpack.c.l.b16 %v179
      %v249 = vunpack.c.l.b16 %v180
      %v250 = vunpack.c.l.b16 %v181
      %v251 = vunpack.c.l.b16 %v182
      %v252 = vunpack.c.l.b16 %v183
      %v253 = vunpack.c.l.b16 %v184
      %v254 = vunpack.c.l.b16 %v185
      %v255 = vunpack.c.l.b16 %v186
      %v256 = vunpack.c.l.b16 %v187
      %v257 = vunpack.c.l.b16 %v188
      %v258 = vunpack.c.l.b16 %v189
      %v259 = vunpack.c.l.b16 %v190
      %v260 = vunpack.c.l.b16 %v191
      %v261 = vunpack.c.l.b16 %v192
      %v262 = vunpack.c.l.b16 %v193
      %v263 = vunpack.c.l.b16 %v194
      %v264 = vunpack.c.l.b16 %v195
      %v265 = vunpack.c.l.b16 %v196
      %v266 = vunpack.c.l.b16 %v197
      %v267 = vunpack.c.l.b16 %v198
      %v268 = vunpack.c.l.b16 %v199
      %v269 = vunpack.c.l.b16 %v200
      %v270 = vunpack.c.l.b16 %v201
      %v271 = vunpack.c.l.b16 %v202
      %v272 = vunpack.c.l.b16 %v203
      %v273 = vunpack.c.l.b16 %v204
      %v274 = vunpack.c.l.b16 %v205
      %v275 = vunpack.c.l.b16 %v206
      %v276 = vpack.c.b16 %v245, %v244
      %v277 = vpack.c.b16 %v247, %v246
      %v278 = vpack.c.b16 %v249, %v248
      %v279 = vpack.c.b16 %v251, %v250
      %v280 = vpack.c.b16 %v253, %v252
      %v281 = vpack.c.b16 %v255, %v254
      %v282 = vpack.c.b16 %v257, %v256
      %v283 = vpack.c.b16 %v259, %v258
      %v284 = vpack.c.b16 %v261, %v260
      %v285 = vpack.c.b16 %v263, %v262
      %v286 = vpack.c.b16 %v265, %v264
      %v287 = vpack.c.b16 %v267, %v266
      %v288 = vpack.c.b16 %v269, %v268
      %v289 = vpack.c.b16 %v271, %v270
      %v290 = vpack.c.b16 %v273, %v272
      %v291 = vpack.c.b16 %v275, %v274
      %v297 = vunpack.c.l.b16 %v207
      %v298 = vunpack.c.l.b16 %v208
      %v299 = vunpack.c.l.b16 %v209
      %v300 = vunpack.c.l.b16 %v210
      %v301 = vunpack.c.l.b16 %v211
      %v302 = vpack.c.b16 %v298, %v297
      %v303 = vpack.c.b16 %v300, %v299
      %v304 = vpack.c.b16 %v301, %v301
      %vm307 = vcmask 293888
      %v309 = vsel %vm307, %v276, 0
      %v312 = vsel %vm307, %v277, 0
      %v315 = vsel %vm307, %v278, 0
      %v318 = vsel %vm307, %v279, 0
      %v321 = vsel %vm307, %v280, 0
      %v324 = vsel %vm307, %v281, 0
      %v327 = vsel %vm307, %v282, 0
      %v330 = vsel %vm307, %v283, 0
      %v333 = vsel %vm307, %v284, 0
      %v336 = vsel %vm307, %v285, 0
      %v339 = vsel %vm307, %v286, 0
      %v342 = vsel %vm307, %v287, 0
      %v345 = vsel %vm307, %v288, 0
      %v348 = vsel %vm307, %v289, 0
      %v351 = vsel %vm307, %v290, 0
      %v354 = vsel %vm307, %v291, 0
      %vm356 = vcmask 1041408
      %v358 = vsel %vm356, %v304, 0
      %360 = vmatprep.subr.bf16.mxu0 0
      %361 = vmatpush1.bf16.msra.mxu0 0
      %362 = vmatprep.subr.bf16.mxu0 0
      %363 = vmatpush1.bf16.msra.mxu0 0
      %364 = vmatprep.subr.bf16.mxu0 0
      %365 = vmatpush1.bf16.msra.mxu0 0
      %366 = vmatprep.subr.bf16.mxu0 0
      %367 = vmatpush1.bf16.msra.mxu0 0
      %368 = vmatprep.subr.bf16.mxu0 0
      %369 = vmatpush1.bf16.msra.mxu0 0
      %370 = vmatprep.subr.bf16.mxu0 0
      %371 = vmatpush1.bf16.msra.mxu0 %v358
      %372 = vmatprep.subr.bf16.mxu0 0
      %373 = vmatpush1.bf16.msra.mxu0 %v303
      %374 = vmatprep.subr.bf16.mxu0 0
      %375 = vmatpush1.bf16.msra.mxu0 %v302
      %376 = vmatprep.subr.bf16.mxu0 0
      %377 = vmatpush2.bf16.msra.mxu0 0
      %378 = vmatprep.subr.bf16.mxu0 0
      %379 = vmatpush2.bf16.msra.mxu0 0
      %380 = vmatprep.subr.bf16.mxu0 0
      %381 = vmatpush2.bf16.msra.mxu0 0
      %382 = vmatprep.subr.bf16.mxu0 0
      %383 = vmatpush2.bf16.msra.mxu0 0
      %384 = vmatprep.subr.bf16.mxu0 0
      %385 = vmatpush2.bf16.msra.mxu0 0
      %386 = vmatprep.subr.bf16.mxu0 0
      %387 = vmatpush2.bf16.msra.mxu0 0
      %388 = vmatprep.subr.bf16.mxu0 0
      %389 = vmatpush2.bf16.msra.mxu0 0
      %390 = vmatprep.subr.bf16.mxu0 0
      %391 = vmatpush2.bf16.msra.mxu0 0
      %392 = vmatprep.mubr.bf16.mxu0 0
      %393 = vmatmul.mubr.bf16.gmra.mxu0 %v309
      %v394 = vpop.f32.mrf.mxu0
      %v395 = vadd.f32 0.0, %v394
      %v396 = vpop.f32.mrf.mxu0
      %v397 = vpop.f32.mrf.mxu0
      %v398 = vadd.f32 0.0, %v397
      %v399 = vpop.f32.mrf.mxu0
      %400 = vmatprep.mubr.bf16.mxu0 0
      %401 = vmatmul.mubr.bf16.gmra.mxu0 %v312
      %v402 = vpop.f32.mrf.mxu0
      %v403 = vadd.f32 0.0, %v402
      %v404 = vpop.f32.mrf.mxu0
      %v405 = vpop.f32.mrf.mxu0
      %v406 = vadd.f32 0.0, %v405
      %v407 = vpop.f32.mrf.mxu0
      %408 = vmatprep.mubr.bf16.mxu0 0
      %409 = vmatmul.mubr.bf16.gmra.mxu0 %v315
      %v410 = vpop.f32.mrf.mxu0
      %v411 = vadd.f32 0.0, %v410
      %v412 = vpop.f32.mrf.mxu0
      %v413 = vpop.f32.mrf.mxu0
      %v414 = vadd.f32 0.0, %v413
      %v415 = vpop.f32.mrf.mxu0
      %416 = vmatprep.mubr.bf16.mxu0 0
      %417 = vmatmul.mubr.bf16.gmra.mxu0 %v318
      %v418 = vpop.f32.mrf.mxu0
      %v419 = vadd.f32 0.0, %v418
      %v420 = vpop.f32.mrf.mxu0
      %v421 = vpop.f32.mrf.mxu0
      %v422 = vadd.f32 0.0, %v421
      %v423 = vpop.f32.mrf.mxu0
      %424 = vmatprep.mubr.bf16.mxu0 0
      %425 = vmatmul.mubr.bf16.gmra.mxu0 %v321
      %v426 = vpop.f32.mrf.mxu0
      %v427 = vadd.f32 0.0, %v426
      %v428 = vpop.f32.mrf.mxu0
      %v429 = vpop.f32.mrf.mxu0
      %v430 = vadd.f32 0.0, %v429
      %v431 = vpop.f32.mrf.mxu0
      %432 = vmatprep.mubr.bf16.mxu0 0
      %433 = vmatmul.mubr.bf16.gmra.mxu0 %v324
      %v434 = vpop.f32.mrf.mxu0
      %v435 = vadd.f32 0.0, %v434
      %v436 = vpop.f32.mrf.mxu0
      %v437 = vpop.f32.mrf.mxu0
      %v438 = vadd.f32 0.0, %v437
      %v439 = vpop.f32.mrf.mxu0
      %440 = vmatprep.mubr.bf16.mxu0 0
      %441 = vmatmul.mubr.bf16.gmra.mxu0 %v327
      %v442 = vpop.f32.mrf.mxu0
      %v443 = vadd.f32 0.0, %v442
      %v444 = vpop.f32.mrf.mxu0
      %v445 = vpop.f32.mrf.mxu0
      %v446 = vadd.f32 0.0, %v445
      %v447 = vpop.f32.mrf.mxu0
      %448 = vmatprep.mubr.bf16.mxu0 0
      %449 = vmatmul.mubr.bf16.gmra.mxu0 %v330
      %v450 = vpop.f32.mrf.mxu0
      %v451 = vadd.f32 0.0, %v450
      %v452 = vpop.f32.mrf.mxu0
      %v453 = vpop.f32.mrf.mxu0
      %v454 = vadd.f32 0.0, %v453
      %v455 = vpop.f32.mrf.mxu0
      %456 = vmatprep.mubr.bf16.mxu0 0
      %457 = vmatmul.mubr.bf16.gmra.mxu0 %v333
      %v458 = vpop.f32.mrf.mxu0
      %v459 = vadd.f32 0.0, %v458
      %v460 = vpop.f32.mrf.mxu0
      %v461 = vpop.f32.mrf.mxu0
      %v462 = vadd.f32 0.0, %v461
      %v463 = vpop.f32.mrf.mxu0
      %464 = vmatprep.mubr.bf16.mxu0 0
      %465 = vmatmul.mubr.bf16.gmra.mxu0 %v336
      %v466 = vpop.f32.mrf.mxu0
      %v467 = vadd.f32 0.0, %v466
      %v468 = vpop.f32.mrf.mxu0
      %v469 = vpop.f32.mrf.mxu0
      %v470 = vadd.f32 0.0, %v469
      %v471 = vpop.f32.mrf.mxu0
      %472 = vmatprep.mubr.bf16.mxu0 0
      %473 = vmatmul.mubr.bf16.gmra.mxu0 %v339
      %v474 = vpop.f32.mrf.mxu0
      %v475 = vadd.f32 0.0, %v474
      %v476 = vpop.f32.mrf.mxu0
      %v477 = vpop.f32.mrf.mxu0
      %v478 = vadd.f32 0.0, %v477
      %v479 = vpop.f32.mrf.mxu0
      %480 = vmatprep.mubr.bf16.mxu0 0
      %481 = vmatmul.mubr.bf16.gmra.mxu0 %v342
      %v482 = vpop.f32.mrf.mxu0
      %v483 = vadd.f32 0.0, %v482
      %v484 = vpop.f32.mrf.mxu0
      %v485 = vpop.f32.mrf.mxu0
      %v486 = vadd.f32 0.0, %v485
      %v487 = vpop.f32.mrf.mxu0
      %488 = vmatprep.mubr.bf16.mxu0 0
      %489 = vmatmul.mubr.bf16.gmra.mxu0 %v345
      %v490 = vpop.f32.mrf.mxu0
      %v491 = vadd.f32 0.0, %v490
      %v492 = vpop.f32.mrf.mxu0
      %v493 = vpop.f32.mrf.mxu0
      %v494 = vadd.f32 0.0, %v493
      %v495 = vpop.f32.mrf.mxu0
      %496 = vmatprep.mubr.bf16.mxu0 0
      %497 = vmatmul.mubr.bf16.gmra.mxu0 %v348
      %v498 = vpop.f32.mrf.mxu0
      %v499 = vadd.f32 0.0, %v498
      %v500 = vpop.f32.mrf.mxu0
      %v501 = vpop.f32.mrf.mxu0
      %v502 = vadd.f32 0.0, %v501
      %v503 = vpop.f32.mrf.mxu0
      %504 = vmatprep.mubr.bf16.mxu0 0
      %505 = vmatmul.mubr.bf16.gmra.mxu0 %v351
      %v506 = vpop.f32.mrf.mxu0
      %v507 = vadd.f32 0.0, %v506
      %v508 = vpop.f32.mrf.mxu0
      %v509 = vpop.f32.mrf.mxu0
      %v510 = vadd.f32 0.0, %v509
      %v511 = vpop.f32.mrf.mxu0
      %512 = vmatprep.mubr.bf16.mxu0 0
      %513 = vmatmul.mubr.bf16.gmra.mxu0 %v354
      %v514 = vpop.f32.mrf.mxu0
      %v515 = vadd.f32 0.0, %v514
      %v516 = vpop.f32.mrf.mxu0
      %v517 = vpop.f32.mrf.mxu0
      %v518 = vadd.f32 0.0, %v517
      %v519 = vpop.f32.mrf.mxu0
      %520 = vdwg.mxu0
      %v521 = vld [vmem:[%s2] sm:$0x1]
      %v522 = vlaneseq
      %v523 = vshrl.u32 %v522, 7
      %v524 = vsub.s32 0, %v523
      %v525 = vrot.slane %v521, %v524
      %v526 = vmul.f32 %v395, %v525
      %v527 = vmul.f32 %v398, %v525
      %v528 = vmul.f32 %v403, %v525
      %v529 = vmul.f32 %v406, %v525
      %v530 = vmul.f32 %v411, %v525
      %v531 = vmul.f32 %v414, %v525
      %v532 = vmul.f32 %v419, %v525
      %v533 = vmul.f32 %v422, %v525
      %v534 = vmul.f32 %v427, %v525
      %v535 = vmul.f32 %v430, %v525
      %v536 = vmul.f32 %v435, %v525
      %v537 = vmul.f32 %v438, %v525
      %v538 = vmul.f32 %v443, %v525
      %v539 = vmul.f32 %v446, %v525
      %v540 = vmul.f32 %v451, %v525
      %v541 = vmul.f32 %v454, %v525
      %v542 = vmul.f32 %v459, %v525
      %v543 = vmul.f32 %v462, %v525
      %v544 = vmul.f32 %v467, %v525
      %v545 = vmul.f32 %v470, %v525
      %v546 = vmul.f32 %v475, %v525
      %v547 = vmul.f32 %v478, %v525
      %v548 = vmul.f32 %v483, %v525
      %v549 = vmul.f32 %v486, %v525
      %v550 = vmul.f32 %v491, %v525
      %v551 = vmul.f32 %v494, %v525
      %v552 = vmul.f32 %v499, %v525
      %v553 = vmul.f32 %v502, %v525
      %v554 = vmul.f32 %v507, %v525
      %v555 = vmul.f32 %v510, %v525
      %v556 = vmul.f32 %v515, %v525
      %v557 = vmul.f32 %v518, %v525
      %v558 = vld [vmem:[%s2 + $0x1] sm:$0x1]
      %v559 = vlaneseq
      %v560 = vshrl.u32 %v559, 7
      %v561 = vsub.s32 0, %v560
      %v562 = vrot.slane %v558, %v561
      %v563 = vadd.f32 %v526, %v562
      %v564 = vadd.f32 %v527, %v562
      %v565 = vadd.f32 %v528, %v562
      %v566 = vadd.f32 %v529, %v562
      %v567 = vadd.f32 %v530, %v562
      %v568 = vadd.f32 %v531, %v562
      %v569 = vadd.f32 %v532, %v562
      %v570 = vadd.f32 %v533, %v562
      %v571 = vadd.f32 %v534, %v562
      %v572 = vadd.f32 %v535, %v562
      %v573 = vadd.f32 %v536, %v562
      %v574 = vadd.f32 %v537, %v562
      %v575 = vadd.f32 %v538, %v562
      %v576 = vadd.f32 %v539, %v562
      %v577 = vadd.f32 %v540, %v562
      %v578 = vadd.f32 %v541, %v562
      %v579 = vadd.f32 %v542, %v562
      %v580 = vadd.f32 %v543, %v562
      %v581 = vadd.f32 %v544, %v562
      %v582 = vadd.f32 %v545, %v562
      %v583 = vadd.f32 %v546, %v562
      %v584 = vadd.f32 %v547, %v562
      %v585 = vadd.f32 %v548, %v562
      %v586 = vadd.f32 %v549, %v562
      %v587 = vadd.f32 %v550, %v562
      %v588 = vadd.f32 %v551, %v562
      %v589 = vadd.f32 %v552, %v562
      %v590 = vadd.f32 %v553, %v562
      %v591 = vadd.f32 %v554, %v562
      %v592 = vadd.f32 %v555, %v562
      %v593 = vadd.f32 %v556, %v562
      %v594 = vadd.f32 %v557, %v562
      %v595 = vmax.f32 %v563, 0.0
      %v596 = vmax.f32 %v564, 0.0
      %v597 = vmax.f32 %v565, 0.0
      %v598 = vmax.f32 %v566, 0.0
      %v599 = vmax.f32 %v567, 0.0
      %v600 = vmax.f32 %v568, 0.0
      %v601 = vmax.f32 %v569, 0.0
      %v602 = vmax.f32 %v570, 0.0
      %v603 = vmax.f32 %v571, 0.0
      %v604 = vmax.f32 %v572, 0.0
      %v605 = vmax.f32 %v573, 0.0
      %v606 = vmax.f32 %v574, 0.0
      %v607 = vmax.f32 %v575, 0.0
      %v608 = vmax.f32 %v576, 0.0
      %v609 = vmax.f32 %v577, 0.0
      %v610 = vmax.f32 %v578, 0.0
      %v611 = vmax.f32 %v579, 0.0
      %v612 = vmax.f32 %v580, 0.0
      %v613 = vmax.f32 %v581, 0.0
      %v614 = vmax.f32 %v582, 0.0
      %v615 = vmax.f32 %v583, 0.0
      %v616 = vmax.f32 %v584, 0.0
      %v617 = vmax.f32 %v585, 0.0
      %v618 = vmax.f32 %v586, 0.0
      %v619 = vmax.f32 %v587, 0.0
      %v620 = vmax.f32 %v588, 0.0
      %v621 = vmax.f32 %v589, 0.0
      %v622 = vmax.f32 %v590, 0.0
      %v623 = vmax.f32 %v591, 0.0
      %v624 = vmax.f32 %v592, 0.0
      %v625 = vmax.f32 %v593, 0.0
      %v626 = vmax.f32 %v594, 0.0
      %627 = vst [vmem:[%s172] sm:$0xff] %v595
      %628 = vst [vmem:[%s172 + $0x8] sm:$0xff] %v596
      %629 = vst [vmem:[%s172 + $0x10] sm:$0xff] %v597
      %630 = vst [vmem:[%s172 + $0x18] sm:$0xff] %v598
      %631 = vst [vmem:[%s172 + $0x20] sm:$0xff] %v599
      %632 = vst [vmem:[%s172 + $0x28] sm:$0xff] %v600
      %633 = vst [vmem:[%s172 + $0x30] sm:$0xff] %v601
      %634 = vst [vmem:[%s172 + $0x38] sm:$0xff] %v602
      %635 = vst [vmem:[%s172 + $0x40] sm:$0xff] %v603
      %636 = vst [vmem:[%s172 + $0x48] sm:$0xff] %v604
      %637 = vst [vmem:[%s172 + $0x50] sm:$0xff] %v605
      %638 = vst [vmem:[%s172 + $0x58] sm:$0xff] %v606
      %639 = vst [vmem:[%s172 + $0x60] sm:$0xff] %v607
      %640 = vst [vmem:[%s172 + $0x68] sm:$0xff] %v608
      %641 = vst [vmem:[%s172 + $0x70] sm:$0xff] %v609
      %642 = vst [vmem:[%s172 + $0x78] sm:$0xff] %v610
      %643 = vst [vmem:[%s172 + $0x80] sm:$0xff] %v611
      %644 = vst [vmem:[%s172 + $0x88] sm:$0xff] %v612
      %645 = vst [vmem:[%s172 + $0x90] sm:$0xff] %v613
      %646 = vst [vmem:[%s172 + $0x98] sm:$0xff] %v614
      %647 = vst [vmem:[%s172 + $0xa0] sm:$0xff] %v615
      %648 = vst [vmem:[%s172 + $0xa8] sm:$0xff] %v616
      %649 = vst [vmem:[%s172 + $0xb0] sm:$0xff] %v617
      %650 = vst [vmem:[%s172 + $0xb8] sm:$0xff] %v618
      %651 = vst [vmem:[%s172 + $0xc0] sm:$0xff] %v619
      %652 = vst [vmem:[%s172 + $0xc8] sm:$0xff] %v620
      %653 = vst [vmem:[%s172 + $0xd0] sm:$0xff] %v621
      %654 = vst [vmem:[%s172 + $0xd8] sm:$0xff] %v622
      %655 = vst [vmem:[%s172 + $0xe0] sm:$0xff] %v623
      %656 = vst [vmem:[%s172 + $0xe8] sm:$0xff] %v624
      %657 = vst [vmem:[%s172 + $0xf0] sm:$0xff] %v625
      %658 = vst [vmem:[%s172 + $0xf8] sm:$0xff] %v626
      %s659 = smul.u32 32, %s14
      %p660 = scmp.lt.s32.totalorder %s659, 63
      %s661 = scalar_select %p660, %s659, 63
      %s662 = smul.addr %s661, 8
      %s663 = scalar_lea.vmem %s3, %s662
      // Predicated region
      $region33: #{up_conv_forward.3} parent=31 // pred_check
        %p664 = pneg %p100
      $region34: #{up_conv_forward.3} parent=31 // pred_check_branch
        %666 = sbr.rel (%p664) target = $region36
      $region35: #{up_conv_forward.3} parent=31 // pred_region
        %s667 = smul.u32 32, %s14
      $region36: #{up_conv_forward.3} parent=31 // pred_fallthru
        _
    $region32: #{up_conv_forward.3} parent=5 // pred_fallthru
      _
    %p668 = scmp.le.s32.totalorder 2, %s9
    // Predicated region
    $region37: #{up_conv_forward.3} parent=5 // pred_check
      %p669 = pneg %p668
    $region38: #{up_conv_forward.3} parent=5 // pred_check_branch
      %671 = sbr.rel (%p669) target = $region40
    $region39: #{up_conv_forward.3} parent=5 // pred_region
      %s672 = ssub.s32 %s9, 2
      // Predicated region
      $region41: #{up_conv_forward.3} parent=39 // pred_check
        %p673 = pneg %p106
      $region42: #{up_conv_forward.3} parent=39 // pred_check_branch
        %675 = sbr.rel (%p673) target = $region44
      $region43: #{up_conv_forward.3} parent=39 // pred_region
        %s676 = smul.u32 32, %s15
        %p677 = scmp.lt.s32.totalorder %s676, 63
        %s678 = scalar_select %p677, %s676, 63
        %s679 = smul.addr %s678, 8
        %s680 = scalar_lea.vmem %s3, %s679
      $region44: #{up_conv_forward.3} parent=39 // pred_fallthru
        _
    $region40: #{up_conv_forward.3} parent=5 // pred_fallthru
      _
  $region6: #{up_conv_forward.3} parent=0 // loop_footer
    %s13 = sadd.s32 1, %s9
  $region7: #{up_conv_forward.3} parent=0 // loop_footer_branch
    %8 = sbr.rel target = $region3
  $region8: #{up_conv_forward.3} parent=0 // loop_exit
    _

</llo_original>
